<compile_context>
chip_gen: v5e
topology: v5e:2x2
jax: 0.10.0
libtpu: 0.0.40
codegen_flags: <defaults>
</compile_context>

<pallas_src>
import functools
import math

import jax
import jax.numpy as jnp
from jax.experimental import pallas as pl
from jax.experimental.pallas import tpu as pltpu

LN_EPS = 1e-5
_INV_SQRT2 = 1.0 / math.sqrt(2.0)


def _cdiv(a, b):
    return -(-a // b)


def _round_up(x, m):
    return _cdiv(x, m) * m


def _tpu_env():
    """Returns (vmem_capacity_bytes_per_core, is_v7x, bf16_elementwise_ok)."""
    kind = ""
    try:
        kind = jax.devices()[0].device_kind.lower()
    except Exception:
        kind = ""
    is_v7 = "v7" in kind
    is_v6 = "v6" in kind
    is_v5 = "v5" in kind

    vmem = None
    try:
        info = pltpu.get_tpu_info()
        vmem = int(getattr(info, "vmem_capacity_bytes"))
    except Exception:
        vmem = None

    # Kind-based cap (per TensorCore); clamp whatever was reported.
    if is_v7:
        kind_cap = 64 * 1024 * 1024
    elif is_v6 or is_v5:
        kind_cap = 128 * 1024 * 1024
    else:
        kind_cap = 64 * 1024 * 1024          # conservative default
    vmem = kind_cap if vmem is None else min(vmem, kind_cap)

    bf16_elem = is_v6 or is_v7               # v5e VPU/EUP has no bf16 path
    return vmem, is_v7, bf16_elem


def _gelu_to_bf16(h, *, bf16):
    """Exact (erf) GELU (PyTorch default); returns bf16 for the second matmul."""
    if bf16:
        hb = h.astype(jnp.bfloat16)
        return (0.5 * hb * (1.0 + jax.lax.erf(hb * _INV_SQRT2))).astype(jnp.bfloat16)
    return (0.5 * h * (1.0 + jax.lax.erf(h * _INV_SQRT2))).astype(jnp.bfloat16)


# ---------------------------------------------------------------------------
# Fused kernel: weights fully VMEM-resident (n_k == 1), 1-D grid over row tiles.
# ---------------------------------------------------------------------------
def _ffn_fused_kernel(x_ref, g_ref, b_ref, w1_ref, b1_ref, w2_ref, b2_ref, o_ref,
                      *, gelu_bf16):
    # LayerNorm (eps=1e-5, affine) in f32.
    x = x_ref[...].astype(jnp.float32)
    mu = jnp.mean(x, axis=-1, keepdims=True)
    var = jnp.mean(jnp.square(x - mu), axis=-1, keepdims=True)
    xn = (x - mu) * jax.lax.rsqrt(var + LN_EPS)
    xn = xn * g_ref[...] + b_ref[...]

    # Linear(dim -> hidden): bf16 operands, f32 accumulation on the MXU.
    h = jnp.dot(xn.astype(jnp.bfloat16), w1_ref[...],
                preferred_element_type=jnp.float32)
    h = h + b1_ref[...]
    h = _gelu_to_bf16(h, bf16=gelu_bf16)
    # Dropout(p=0.0) is the identity.

    # Linear(hidden -> dim), written straight to the output (no VMEM accumulator).
    out = jnp.dot(h, w2_ref[...], preferred_element_type=jnp.float32)
    o_ref[...] = (out + b2_ref[...]).astype(o_ref.dtype)


# ---------------------------------------------------------------------------
# Tiled kernel: hidden axis tiled (weights too large for residency).
# ---------------------------------------------------------------------------
def _ffn_tiled_kernel(x_ref, g_ref, b_ref, w1_ref, b1_ref, w2_ref, b2_ref, o_ref,
                      acc_ref, xn_ref, *, gelu_bf16):
    k = pl.program_id(1)

    @pl.when(k == 0)
    def _():
        x = x_ref[...].astype(jnp.float32)
        mu = jnp.mean(x, axis=-1, keepdims=True)
        var = jnp.mean(jnp.square(x - mu), axis=-1, keepdims=True)
        xn = (x - mu) * jax.lax.rsqrt(var + LN_EPS)
        # Cache LayerNorm output as bf16 (cast once, reused for every k).
        xn_ref[...] = (xn * g_ref[...] + b_ref[...]).astype(xn_ref.dtype)
        acc_ref[...] = jnp.zeros_like(acc_ref)

    h = jnp.dot(xn_ref[...], w1_ref[...], preferred_element_type=jnp.float32)
    h = h + b1_ref[...]
    h = _gelu_to_bf16(h, bf16=gelu_bf16)

    acc_ref[...] += jnp.dot(h, w2_ref[...], preferred_element_type=jnp.float32)

    @pl.when(k == pl.num_programs(1) - 1)
    def _():
        o_ref[...] = (acc_ref[...] + b2_ref[...]).astype(o_ref.dtype)


def _weight_spec(shape, index_map, single_buffer):
    if single_buffer:
        try:
            # DMA'd once (constant block index); the second buffer is pure waste
            # on v7x's 64 MiB VMEM.
            return pl.BlockSpec(shape, index_map, pipeline_mode=pl.Buffered(1))
        except Exception:
            pass
    return pl.BlockSpec(shape, index_map)


def feedforward_pallas(x, params, *, tm=None, th=None):
    """x: (B, N, dim) float32.  params: LN/Linear weights in math layout."""
    B, N, dim = x.shape
    hidden = params["w1"].shape[1]
    M = B * N

    vmem_cap, is_v7x, gelu_bf16 = _tpu_env()
    vmem_limit = max(32 << 20, vmem_cap - (16 << 20))
    budget = vmem_limit - (8 << 20)           # headroom for compiler scratch

    # ---- Row tiling: big tiles, minimal padding, even #tiles on v7x (2 TCs) ----
    if tm is None:
        target = 256 if is_v7x else 512
        n_rows = max(1, _cdiv(M, target))
        if is_v7x and M >= 16 and n_rows % 2 == 1:
            n_rows = 2 if n_rows == 1 else n_rows + 1
        tm = max(8, _round_up(_cdiv(M, n_rows), 8))
    else:
        tm = max(8, _round_up(min(tm, _round_up(M, 8)), 8))
    n_rows = _cdiv(M, tm)
    M_pad = n_rows * tm

    act_bytes = 2 * tm * dim * 4 * 2          # x + out tiles, double buffered

    # ---- Hidden tiling: prefer fully VMEM-resident weights (DMA'd once) ----
    if th is None:
        wbuf = 1 if is_v7x else 2
        resident_bytes = wbuf * (dim * hidden + hidden * dim) * 2   # bf16 W1+W2
        inter_bytes = 2 * tm * hidden * 4                           # (tm, hidden) f32
        if resident_bytes + act_bytes + inter_bytes <= budget:
            th = hidden
        else:
            th = 512
            while th > 128 and (2 * 2 * dim * th * 2 + act_bytes
                                + 2 * tm * th * 4 + tm * dim * 6) > budget:
                th //= 2

    if th >= hidden:
        th = hidden
        hidden_pad = hidden
        n_k = 1
    else:
        th = max(128, _round_up(th, 128))
        hidden_pad = _round_up(hidden, th)
        n_k = hidden_pad // th

    weight_bytes = (dim * hidden_pad + hidden_pad * dim) * 2
    single_buf_w = is_v7x and n_k == 1 and weight_bytes > (4 << 20)

    # ---- Prepare operands ----
    x2 = x.reshape(M, dim)
    if M_pad != M:
        x2 = jnp.pad(x2, ((0, M_pad - M), (0, 0)))

    w1 = params["w1"].astype(jnp.bfloat16)
    w2 = params["w2"].astype(jnp.bfloat16)
    b1 = params["b1"].astype(jnp.float32)
    if hidden_pad != hidden:
        # Zero-padding the hidden axis is exact: GELU(0 + 0) == 0 and the padded
        # rows of W2 are zero.
        w1 = jnp.pad(w1, ((0, 0), (0, hidden_pad - hidden)))
        w2 = jnp.pad(w2, ((0, hidden_pad - hidden), (0, 0)))
        b1 = jnp.pad(b1, ((0, hidden_pad - hidden),))

    g = params["ln_gamma"].reshape(1, dim).astype(jnp.float32)
    beta = params["ln_beta"].reshape(1, dim).astype(jnp.float32)
    b1 = b1.reshape(1, hidden_pad)
    b2 = params["b2"].reshape(1, dim).astype(jnp.float32)

    if n_k == 1:
        kernel = functools.partial(_ffn_fused_kernel, gelu_bf16=gelu_bf16)
        out2 = pl.pallas_call(
            kernel,
            out_shape=jax.ShapeDtypeStruct((M_pad, dim), x.dtype),
            grid_spec=pltpu.PrefetchScalarGridSpec(
                num_scalar_prefetch=0,
                grid=(n_rows,),
                in_specs=[
                    pl.BlockSpec((tm, dim), lambda i: (i, 0)),                 # x rows
                    pl.BlockSpec((1, dim), lambda i: (0, 0)),                  # LN gamma
                    pl.BlockSpec((1, dim), lambda i: (0, 0)),                  # LN beta
                    _weight_spec((dim, hidden_pad), lambda i: (0, 0),
                                 single_buf_w),                                # W1
                    pl.BlockSpec((1, hidden_pad), lambda i: (0, 0)),           # b1
                    _weight_spec((hidden_pad, dim), lambda i: (0, 0),
                                 single_buf_w),                                # W2
                    pl.BlockSpec((1, dim), lambda i: (0, 0)),                  # b2
                ],
                out_specs=pl.BlockSpec((tm, dim), lambda i: (i, 0)),
            ),
            compiler_params=pltpu.CompilerParams(
                dimension_semantics=("parallel",),
                vmem_limit_bytes=int(vmem_limit),
            ),
        )(x2, g, beta, w1, b1, w2, b2)
    else:
        kernel = functools.partial(_ffn_tiled_kernel, gelu_bf16=gelu_bf16)
        out2 = pl.pallas_call(
            kernel,
            out_shape=jax.ShapeDtypeStruct((M_pad, dim), x.dtype),
            grid_spec=pltpu.PrefetchScalarGridSpec(
                num_scalar_prefetch=0,
                grid=(n_rows, n_k),                       # reduction axis last
                in_specs=[
                    pl.BlockSpec((tm, dim), lambda i, k: (i, 0)),   # x rows
                    pl.BlockSpec((1, dim), lambda i, k: (0, 0)),    # LN gamma
                    pl.BlockSpec((1, dim), lambda i, k: (0, 0)),    # LN beta
                    pl.BlockSpec((dim, th), lambda i, k: (0, k)),   # W1 tile
                    pl.BlockSpec((1, th), lambda i, k: (0, k)),     # b1 tile
                    pl.BlockSpec((th, dim), lambda i, k: (k, 0)),   # W2 tile
                    pl.BlockSpec((1, dim), lambda i, k: (0, 0)),    # b2
                ],
                out_specs=pl.BlockSpec((tm, dim), lambda i, k: (i, 0)),
                scratch_shapes=[
                    pltpu.VMEM((tm, dim), jnp.float32),    # second-matmul accumulator
                    pltpu.VMEM((tm, dim), jnp.bfloat16),   # cached LN output (bf16)
                ],
            ),
            compiler_params=pltpu.CompilerParams(
                dimension_semantics=("parallel", "arbitrary"),
                vmem_limit_bytes=int(vmem_limit),
            ),
        )(x2, g, beta, w1, b1, w2, b2)

    if M_pad != M:
        out2 = out2[:M]
    return out2.reshape(B, N, dim)


def init_params(key, dim, hidden_dim):
    k1, k2, k3, k4 = jax.random.split(key, 4)
    # PyTorch Linear stores (out, in); we keep math layout (in, out): y = x @ W + b.
    bound1 = 1.0 / math.sqrt(dim)
    bound2 = 1.0 / math.sqrt(hidden_dim)
    return {
        "ln_gamma": jnp.ones((dim,), jnp.float32),
        "ln_beta": jnp.zeros((dim,), jnp.float32),
        "w1": jax.random.uniform(k1, (dim, hidden_dim), jnp.float32, -bound1, bound1),
        "b1": jax.random.uniform(k2, (hidden_dim,), jnp.float32, -bound1, bound1),
        "w2": jax.random.uniform(k3, (hidden_dim, dim), jnp.float32, -bound2, bound2),
        "b2": jax.random.uniform(k4, (dim,), jnp.float32, -bound2, bound2),
    }


def feedforward_ref(x, p):
    mu = jnp.mean(x, axis=-1, keepdims=True)
    var = jnp.mean((x - mu) ** 2, axis=-1, keepdims=True)
    xn = (x - mu) / jnp.sqrt(var + LN_EPS) * p["ln_gamma"] + p["ln_beta"]
    h = xn @ p["w1"] + p["b1"]
    h = 0.5 * h * (1.0 + jax.lax.erf(h * _INV_SQRT2))
    return h @ p["w2"] + p["b2"]


if __name__ == "__main__":
    key = jax.random.PRNGKey(0)
    kx, kp, kx2, kp2 = jax.random.split(key, 4)

    # Test 1: fused path (weights VMEM-resident, n_k == 1).
    B, N, dim, hidden = 2, 8, 32, 64
    x = jax.random.normal(kx, (B, N, dim), jnp.float32)
    params = init_params(kp, dim, hidden)
    out = jax.block_until_ready(feedforward_pallas(x, params))
    ref = feedforward_ref(x, params)
    assert out.shape == (B, N, dim)
    # bf16 matmul operands (f32 accumulation) vs. pure-f32 reference.
    assert jnp.allclose(out, ref, atol=2.5e-2, rtol=2.5e-2), (
        float(jnp.max(jnp.abs(out - ref))))

    # Test 2: tiled fallback path (hidden axis tiled, accumulator + bf16 LN cache).
    dim2, hidden2 = 32, 256
    x2 = jax.random.normal(kx2, (B, N, dim2), jnp.float32)
    params2 = init_params(kp2, dim2, hidden2)
    out2 = jax.block_until_ready(feedforward_pallas(x2, params2, th=128))
    ref2 = feedforward_ref(x2, params2)
    assert out2.shape == (B, N, dim2)
    assert jnp.allclose(out2, ref2, atol=2.5e-2, rtol=2.5e-2), (
        float(jnp.max(jnp.abs(out2 - ref2))))

    print("KERNEL_OK")
</pallas_src>

<mosaic_0001>
module attributes {stable_mosaic.version = 11 : i64} {
  func.func @_ffn_fused_kernel(%arg0: i32, %arg1: memref<16x32xf32, #tpu.memory_space<vmem>>, %arg2: memref<1x32xf32, #tpu.memory_space<vmem>>, %arg3: memref<1x32xf32, #tpu.memory_space<vmem>>, %arg4: memref<32x64xbf16, #tpu.memory_space<vmem>>, %arg5: memref<1x64xf32, #tpu.memory_space<vmem>>, %arg6: memref<64x32xbf16, #tpu.memory_space<vmem>>, %arg7: memref<1x32xf32, #tpu.memory_space<vmem>>, %arg8: memref<16x32xf32, #tpu.memory_space<vmem>>) attributes {dimension_semantics = [#tpu.dimension_semantics<parallel>], iteration_bounds = array<i64: 1>, scalar_prefetch = 0 : i64, scratch_operands = 0 : i64, tpu.core_type = #tpu.core_type<tc>, window_params = [{transform_indices = @transform_0, window_bounds = array<i64: 16, 32>}, {pipeline_mode = #tpu.pipeline_mode<synchronous>, transform_indices = @transform_1, window_bounds = array<i64: 1, 32>}, {pipeline_mode = #tpu.pipeline_mode<synchronous>, transform_indices = @transform_2, window_bounds = array<i64: 1, 32>}, {pipeline_mode = #tpu.pipeline_mode<synchronous>, transform_indices = @transform_3, window_bounds = array<i64: 32, 64>}, {pipeline_mode = #tpu.pipeline_mode<synchronous>, transform_indices = @transform_4, window_bounds = array<i64: 1, 64>}, {pipeline_mode = #tpu.pipeline_mode<synchronous>, transform_indices = @transform_5, window_bounds = array<i64: 64, 32>}, {pipeline_mode = #tpu.pipeline_mode<synchronous>, transform_indices = @transform_6, window_bounds = array<i64: 1, 32>}, {transform_indices = @transform_7, window_bounds = array<i64: 16, 32>}]} {
    %c0 = arith.constant 0 : index
    %c0_0 = arith.constant 0 : index
    %0 = vector.load %arg1[%c0, %c0_0] : memref<16x32xf32, #tpu.memory_space<vmem>>, vector<16x32xf32>
    %cst = arith.constant dense<0.000000e+00> : vector<16xf32>
    %1 = vector.multi_reduction <add>, %0, %cst [1] : vector<16x32xf32> to vector<16xf32>
    %2 = vector.shape_cast %1 : vector<16xf32> to vector<16x1xf32>
    %cst_1 = arith.constant 3.200000e+01 : f32
    %3 = vector.broadcast %cst_1 : f32 to vector<16x1xf32>
    %4 = arith.divf %2, %3 : vector<16x1xf32>
    %5 = vector.broadcast %4 : vector<16x1xf32> to vector<16x32xf32>
    %6 = arith.subf %0, %5 : vector<16x32xf32>
    %7 = arith.mulf %6, %6 : vector<16x32xf32>
    %cst_2 = arith.constant dense<0.000000e+00> : vector<16xf32>
    %8 = vector.multi_reduction <add>, %7, %cst_2 [1] : vector<16x32xf32> to vector<16xf32>
    %9 = vector.shape_cast %8 : vector<16xf32> to vector<16x1xf32>
    %cst_3 = arith.constant 3.200000e+01 : f32
    %10 = vector.broadcast %cst_3 : f32 to vector<16x1xf32>
    %11 = arith.divf %9, %10 : vector<16x1xf32>
    %12 = vector.broadcast %4 : vector<16x1xf32> to vector<16x32xf32>
    %13 = arith.subf %0, %12 : vector<16x32xf32>
    %cst_4 = arith.constant 9.99999974E-6 : f32
    %14 = vector.broadcast %cst_4 : f32 to vector<16x1xf32>
    %15 = arith.addf %11, %14 : vector<16x1xf32>
    %16 = math.rsqrt %15 : vector<16x1xf32>
    %17 = vector.broadcast %16 : vector<16x1xf32> to vector<16x32xf32>
    %18 = arith.mulf %13, %17 : vector<16x32xf32>
    %c0_5 = arith.constant 0 : index
    %c0_6 = arith.constant 0 : index
    %19 = vector.load %arg2[%c0_5, %c0_6] : memref<1x32xf32, #tpu.memory_space<vmem>>, vector<1x32xf32>
    %20 = vector.broadcast %19 : vector<1x32xf32> to vector<16x32xf32>
    %21 = arith.mulf %18, %20 : vector<16x32xf32>
    %c0_7 = arith.constant 0 : index
    %c0_8 = arith.constant 0 : index
    %22 = vector.load %arg3[%c0_7, %c0_8] : memref<1x32xf32, #tpu.memory_space<vmem>>, vector<1x32xf32>
    %23 = vector.broadcast %22 : vector<1x32xf32> to vector<16x32xf32>
    %24 = arith.addf %21, %23 : vector<16x32xf32>
    %25 = arith.truncf %24 : vector<16x32xf32> to vector<16x32xbf16>
    %c0_9 = arith.constant 0 : index
    %c0_10 = arith.constant 0 : index
    %26 = vector.load %arg4[%c0_9, %c0_10] : memref<32x64xbf16, #tpu.memory_space<vmem>>, vector<32x64xbf16>
    %cst_11 = arith.constant dense<0.000000e+00> : vector<16x64xf32>
    %27 = tpu.matmul %25, %26, %cst_11 {dimension_numbers = #tpu.dot_dimension_numbers<[1], [0], [0], [1], [0, 0, 1, 1], [], []>} : vector<16x32xbf16>, vector<32x64xbf16>, vector<16x64xf32> -> vector<16x64xf32>
    %c0_12 = arith.constant 0 : index
    %c0_13 = arith.constant 0 : index
    %28 = vector.load %arg5[%c0_12, %c0_13] : memref<1x64xf32, #tpu.memory_space<vmem>>, vector<1x64xf32>
    %29 = vector.broadcast %28 : vector<1x64xf32> to vector<16x64xf32>
    %30 = arith.addf %27, %29 : vector<16x64xf32>
    %cst_14 = arith.constant 5.000000e-01 : f32
    %31 = vector.broadcast %cst_14 : f32 to vector<16x64xf32>
    %32 = arith.mulf %31, %30 : vector<16x64xf32>
    %cst_15 = arith.constant 0.707106769 : f32
    %33 = vector.broadcast %cst_15 : f32 to vector<16x64xf32>
    %34 = arith.mulf %30, %33 : vector<16x64xf32>
    %35 = math.erf %34 : vector<16x64xf32>
    %cst_16 = arith.constant 1.000000e+00 : f32
    %36 = vector.broadcast %cst_16 : f32 to vector<16x64xf32>
    %37 = arith.addf %36, %35 : vector<16x64xf32>
    %38 = arith.mulf %32, %37 : vector<16x64xf32>
    %39 = arith.truncf %38 : vector<16x64xf32> to vector<16x64xbf16>
    %c0_17 = arith.constant 0 : index
    %c0_18 = arith.constant 0 : index
    %40 = vector.load %arg6[%c0_17, %c0_18] : memref<64x32xbf16, #tpu.memory_space<vmem>>, vector<64x32xbf16>
    %cst_19 = arith.constant dense<0.000000e+00> : vector<16x32xf32>
    %41 = tpu.matmul %39, %40, %cst_19 {dimension_numbers = #tpu.dot_dimension_numbers<[1], [0], [0], [1], [0, 0, 1, 1], [], []>} : vector<16x64xbf16>, vector<64x32xbf16>, vector<16x32xf32> -> vector<16x32xf32>
    %c0_20 = arith.constant 0 : index
    %c0_21 = arith.constant 0 : index
    %42 = vector.load %arg7[%c0_20, %c0_21] : memref<1x32xf32, #tpu.memory_space<vmem>>, vector<1x32xf32>
    %43 = vector.broadcast %42 : vector<1x32xf32> to vector<16x32xf32>
    %44 = arith.addf %41, %43 : vector<16x32xf32>
    %c0_22 = arith.constant 0 : index
    %c0_23 = arith.constant 0 : index
    %45 = vector.load %arg8[%c0_22, %c0_23] : memref<16x32xf32, #tpu.memory_space<vmem>>, vector<16x32xf32>
    tpu.vector_store %arg8[%c0_22, %c0_23], %44 {strides = array<i32>} : memref<16x32xf32, #tpu.memory_space<vmem>>, vector<16x32xf32>,
    return
  }
  func.func @transform_0(%arg0: i32) -> (i32, i32) {
    %c0_i32 = arith.constant 0 : i32
    %c0_i32_0 = arith.constant 0 : i32
    return %arg0, %c0_i32 : i32, i32
  }
  func.func @transform_1(%arg0: i32) -> (i32, i32) {
    %c0_i32 = arith.constant 0 : i32
    %c0_i32_0 = arith.constant 0 : i32
    %c0_i32_1 = arith.constant 0 : i32
    return %c0_i32, %c0_i32_0 : i32, i32
  }
  func.func @transform_2(%arg0: i32) -> (i32, i32) {
    %c0_i32 = arith.constant 0 : i32
    %c0_i32_0 = arith.constant 0 : i32
    %c0_i32_1 = arith.constant 0 : i32
    return %c0_i32, %c0_i32_0 : i32, i32
  }
  func.func @transform_3(%arg0: i32) -> (i32, i32) {
    %c0_i32 = arith.constant 0 : i32
    %c0_i32_0 = arith.constant 0 : i32
    %c0_i32_1 = arith.constant 0 : i32
    return %c0_i32, %c0_i32_0 : i32, i32
  }
  func.func @transform_4(%arg0: i32) -> (i32, i32) {
    %c0_i32 = arith.constant 0 : i32
    %c0_i32_0 = arith.constant 0 : i32
    %c0_i32_1 = arith.constant 0 : i32
    return %c0_i32, %c0_i32_0 : i32, i32
  }
  func.func @transform_5(%arg0: i32) -> (i32, i32) {
    %c0_i32 = arith.constant 0 : i32
    %c0_i32_0 = arith.constant 0 : i32
    %c0_i32_1 = arith.constant 0 : i32
    return %c0_i32, %c0_i32_0 : i32, i32
  }
  func.func @transform_6(%arg0: i32) -> (i32, i32) {
    %c0_i32 = arith.constant 0 : i32
    %c0_i32_0 = arith.constant 0 : i32
    %c0_i32_1 = arith.constant 0 : i32
    return %c0_i32, %c0_i32_0 : i32, i32
  }
  func.func @transform_7(%arg0: i32) -> (i32, i32) {
    %c0_i32 = arith.constant 0 : i32
    %c0_i32_0 = arith.constant 0 : i32
    return %arg0, %c0_i32 : i32, i32
  }
}

</mosaic_0001>

<llo_original>
// kernel: tpu_custom_call.1
$region0: #{tpu_custom_call.1}
  #allocation0 [shape = 'u32[]', space=smem, size = 0x4, offset = 0x4, fixed_abs, tag = 'smem constant byte address 0x4 - core index']
  #allocation1 [shape = 'u32[72,128]{1,0:T(1,128)}', space=vmem, size = 0x9000, scoped, tag = 'internal scratch']
  %s0 = inlined_call_operand.vmem [shape: f32[16,32], index: 0, kind: input, shape index: {}]
  %s1 = inlined_call_operand.vmem [shape: f32[1,32], index: 1, kind: input, shape index: {}]
  %s2 = inlined_call_operand.vmem [shape: f32[1,32], index: 2, kind: input, shape index: {}]
  %s3 = inlined_call_operand.vmem [shape: bf16[32,64], index: 3, kind: input, shape index: {}]
  %s4 = inlined_call_operand.vmem [shape: f32[1,64], index: 4, kind: input, shape index: {}]
  %s5 = inlined_call_operand.vmem [shape: bf16[64,32], index: 5, kind: input, shape index: {}]
  %s6 = inlined_call_operand.vmem [shape: f32[1,32], index: 6, kind: input, shape index: {}]
  %s7 = inlined_call_operand.hbm [shape: f32[16,32], index: 7, kind: output, shape index: {}]
  %s8 = sld [smem:[#allocation0]]
  $region38: #{tpu_custom_call.1} parent=0
    _
  %s10 = ssub.s32 1, %s8
  %s11 = scalar_select 0, %s10, %s8
  $region1: #{tpu_custom_call.1} parent=0
    #allocation2 [shape = 'u8[8192]{0}', space=vmem, size = 0x2000, scoped, tag = 'output window, operand 0, single buffered']
    #allocation3 [shape = 's32[1]{0}', space=sflag, size = 0x4, scoped, tag = 'scoped memory for tpu_custom_call.1']
    %12 = vsyncpa [#allocation3], 0
    // Predicated region
    $region2: #{tpu_custom_call.1} parent=1 // pred_check
      _
    $region3: #{tpu_custom_call.1} parent=1 // pred_check_branch
      %14 = sbr.rel (0) target = $region5
    $region4: #{tpu_custom_call.1} parent=1 // pred_region
      _
    $region5: #{tpu_custom_call.1} parent=1 // pred_fallthru
      _
    // Predicated region
    $region6: #{tpu_custom_call.1} parent=1 // pred_check
      _
    $region7: #{tpu_custom_call.1} parent=1 // pred_check_branch
      %16 = sbr.rel (0) target = $region9
    $region8: #{tpu_custom_call.1} parent=1 // pred_region
      _
    $region9: #{tpu_custom_call.1} parent=1 // pred_fallthru
      _
    // Predicated region
    $region10: #{tpu_custom_call.1} parent=1 // pred_check
      _
    $region11: #{tpu_custom_call.1} parent=1 // pred_check_branch
      %18 = sbr.rel (0) target = $region13
    $region12: #{tpu_custom_call.1} parent=1 // pred_region
      _
    $region13: #{tpu_custom_call.1} parent=1 // pred_fallthru
      _
    // Predicated region
    $region14: #{tpu_custom_call.1} parent=1 // pred_check
      _
    $region15: #{tpu_custom_call.1} parent=1 // pred_check_branch
      %20 = sbr.rel (0) target = $region17
    $region16: #{tpu_custom_call.1} parent=1 // pred_region
      _
    $region17: #{tpu_custom_call.1} parent=1 // pred_fallthru
      _
    // Predicated region
    $region18: #{tpu_custom_call.1} parent=1 // pred_check
      _
    $region19: #{tpu_custom_call.1} parent=1 // pred_check_branch
      %22 = sbr.rel (0) target = $region21
    $region20: #{tpu_custom_call.1} parent=1 // pred_region
      _
    $region21: #{tpu_custom_call.1} parent=1 // pred_fallthru
      _
    // Predicated region
    $region22: #{tpu_custom_call.1} parent=1 // pred_check
      _
    $region23: #{tpu_custom_call.1} parent=1 // pred_check_branch
      %24 = sbr.rel (0) target = $region25
    $region24: #{tpu_custom_call.1} parent=1 // pred_region
      _
    $region25: #{tpu_custom_call.1} parent=1 // pred_fallthru
      _
    // Predicated region
    $region26: #{tpu_custom_call.1} parent=1 // pred_check
      _
    $region27: #{tpu_custom_call.1} parent=1 // pred_check_branch
      %26 = sbr.rel (0) target = $region29
    $region28: #{tpu_custom_call.1} parent=1 // pred_region
      _
    $region29: #{tpu_custom_call.1} parent=1 // pred_fallthru
      _
    %v28 = vld [vmem:[%s0] sm:$0xff]
    %v29 = vld [vmem:[%s0 + $0x8] sm:$0xff]
    %vm30 = vcmask 261120
    %v31 = vsel %vm30, %v28, 0.0
    %32 = vadd.xlane.f32.xlu0 %v31
    %v33 = vpop.xlane.xlu0 %32
    %v34 = vsel %vm30, %v29, 0.0
    %35 = vadd.xlane.f32.xlu0 %v34
    %v36 = vpop.xlane.xlu0 %35
    %v37 = vrcp.pop 32.0
    %v38 = vmul.f32 32.0, %v37
    %v39 = vsub.f32 1.0, %v38
    %v40 = vmul.f32 %v37, %v39
    %v41 = vadd.f32 %v37, %v40
    %vm42 = vweird.f32 %v37
    %v43 = vsel %vm42, %v37, %v41
    %v44 = vmul.f32 %v33, %v43
    %v45 = vmul.f32 %v36, %v43
    %v46 = vsub.f32 %v28, %v44
    %v47 = vsub.f32 %v29, %v45
    %v48 = vmul.f32 %v46, %v46
    %v49 = vmul.f32 %v47, %v47
    %v50 = vsel %vm30, %v48, 0.0
    %51 = vadd.xlane.f32.xlu0 %v50
    %v52 = vpop.xlane.xlu0 %51
    %v53 = vsel %vm30, %v49, 0.0
    %54 = vadd.xlane.f32.xlu0 %v53
    %v55 = vpop.xlane.xlu0 %54
    %v56 = vmul.f32 %v52, %v43
    %v57 = vmul.f32 %v55, %v43
    %v58 = vadd.f32 %v56, 1e-05
    %v59 = vadd.f32 %v57, 1e-05
    %v60 = vrsqrt.pop %v58
    %v61 = vmul.f32 %v60, %v58
    %v62 = vmul.f32 %v61, %v60
    %v63 = vmul.f32 0.5, %v62
    %v64 = vsub.f32 1.5, %v63
    %v65 = vmul.f32 %v60, %v64
    %vm66 = vweird.f32 %v58
    %vm67 = vweird.f32 %v60
    %vm68 = vmor %vm66, %vm67
    %v69 = vsel %vm68, %v60, %v65
    %v70 = vrsqrt.pop %v59
    %v71 = vmul.f32 %v70, %v59
    %v72 = vmul.f32 %v71, %v70
    %v73 = vmul.f32 0.5, %v72
    %v74 = vsub.f32 1.5, %v73
    %v75 = vmul.f32 %v70, %v74
    %vm76 = vweird.f32 %v59
    %vm77 = vweird.f32 %v70
    %vm78 = vmor %vm76, %vm77
    %v79 = vsel %vm78, %v70, %v75
    %v80 = vmul.f32 %v46, %v69
    %v81 = vmul.f32 %v47, %v79
    %v82 = vld [vmem:[%s1] sm:$0x1]
    %v84 = vperm.slane %v82, 0
    %v86 = vmul.f32 %v80, %v84
    %v87 = vmul.f32 %v81, %v84
    %v88 = vld [vmem:[%s2] sm:$0x1]
    %v90 = vperm.slane %v88, 0
    %v92 = vadd.f32 %v86, %v90
    %v93 = vadd.f32 %v87, %v90
    %v94 = vpack.c.bf16 %v93, %v92
    %v95 = vld [vmem:[%s3] sm:$0xf]
    %v96 = vld [vmem:[%s3 + $0x4] sm:$0xf]
    %v97 = vld [vmem:[%s3 + $0x8] sm:$0xf]
    %v98 = vld [vmem:[%s3 + $0xc] sm:$0xf]
    %v99 = vld [vmem:[%s4] sm:$0x1]
    %v101 = vperm.slane %v99, 0
    %v107 = vunpack.c.l.b16 %v95
    %v108 = vunpack.c.l.b16 %v96
    %v109 = vunpack.c.l.b16 %v97
    %v110 = vunpack.c.l.b16 %v98
    %v111 = vpack.c.b16 %v108, %v107
    %v112 = vpack.c.b16 %v110, %v109
    %v116 = vsel %vm30, %v94, 0
    %118 = vmatpush.bf16.msra.mxu0 0
    %119 = vmatpush.bf16.msra.mxu0 0
    %120 = vmatpush.bf16.msra.mxu0 0
    %121 = vmatpush.bf16.msra.mxu0 0
    %122 = vmatpush.bf16.msra.mxu0 0
    %123 = vmatpush.bf16.msra.mxu0 0
    %124 = vmatpush.bf16.msra.mxu0 %v112
    %125 = vmatpush.bf16.msra.mxu0 %v111
    %126 = vmatmul.bf16.gmra.mxu0 %v116
    %v127 = vpop.f32.mrf.mxu0
    %v128 = vadd.f32 %v101, %v127
    %v129 = vpop.f32.mrf.mxu0
    %v130 = vadd.f32 %v101, %v129
    %131 = vdwg.mxu0
    %v132 = vmul.f32 %v128, 0.5
    %v133 = vmul.f32 %v130, 0.5
    %v134 = vmul.f32 %v128, 0.70710677
    %v135 = vmul.f32 %v130, 0.70710677
    %v136 = vmul.f32 %v134, %v134
    %v137 = vmin.f32 16.0, %v136
    %v138 = vmul.f32 %v137, 2.1237322e-06
    %v139 = vadd.f32 %v138, 0.00028619796
    %v140 = vmul.f32 %v137, %v139
    %v141 = vadd.f32 %v140, 0.0036580483
    %v142 = vmul.f32 %v137, %v141
    %v143 = vadd.f32 %v142, 0.05243302
    %v144 = vmul.f32 %v137, %v143
    %v145 = vadd.f32 %v144, 0.18741608
    %v146 = vmul.f32 %v137, %v145
    %v147 = vadd.f32 %v146, 1.1283791
    %v148 = vmul.f32 %v134, %v147
    %v149 = vmul.f32 %v137, 3.8918573e-05
    %v150 = vadd.f32 %v149, 0.001143296
    %v151 = vmul.f32 %v137, %v150
    %v152 = vadd.f32 %v151, 0.014752088
    %v153 = vmul.f32 %v137, %v152
    %v154 = vadd.f32 %v153, 0.112945676
    %v155 = vmul.f32 %v137, %v154
    %v156 = vadd.f32 %v155, 0.4994258
    %v157 = vmul.f32 %v137, %v156
    %v158 = vadd.f32 %v157, 1.0
    %v159 = vrcp.pop %v158
    %v160 = vmul.f32 %v158, %v159
    %v161 = vsub.f32 1.0, %v160
    %v162 = vmul.f32 %v159, %v161
    %v163 = vadd.f32 %v159, %v162
    %vm164 = vweird.f32 %v158
    %vm165 = vweird.f32 %v159
    %vm166 = vmor %vm164, %vm165
    %v167 = vsel %vm166, %v159, %v163
    %v168 = vand.u32 2147483647, %v158
    %vm169 = vcmp.eq.f32.partialorder %v168, 8.507059e+37
    %v170 = vand.u32 %v158, 2147483648
    %v171 = vor.u32 1.1754944e-38, %v170
    %v172 = vsel %vm169, %v171, %v167
    %v173 = vmul.f32 %v148, %v172
    %v174 = vmin.f32 %v173, 1.0
    %v175 = vmax.f32 %v174, -1.0
    %v176 = vmul.f32 %v135, %v135
    %v177 = vmin.f32 16.0, %v176
    %v178 = vmul.f32 %v177, 2.1237322e-06
    %v179 = vadd.f32 %v178, 0.00028619796
    %v180 = vmul.f32 %v177, %v179
    %v181 = vadd.f32 %v180, 0.0036580483
    %v182 = vmul.f32 %v177, %v181
    %v183 = vadd.f32 %v182, 0.05243302
    %v184 = vmul.f32 %v177, %v183
    %v185 = vadd.f32 %v184, 0.18741608
    %v186 = vmul.f32 %v177, %v185
    %v187 = vadd.f32 %v186, 1.1283791
    %v188 = vmul.f32 %v135, %v187
    %v189 = vmul.f32 %v177, 3.8918573e-05
    %v190 = vadd.f32 %v189, 0.001143296
    %v191 = vmul.f32 %v177, %v190
    %v192 = vadd.f32 %v191, 0.014752088
    %v193 = vmul.f32 %v177, %v192
    %v194 = vadd.f32 %v193, 0.112945676
    %v195 = vmul.f32 %v177, %v194
    %v196 = vadd.f32 %v195, 0.4994258
    %v197 = vmul.f32 %v177, %v196
    %v198 = vadd.f32 %v197, 1.0
    %v199 = vrcp.pop %v198
    %v200 = vmul.f32 %v198, %v199
    %v201 = vsub.f32 1.0, %v200
    %v202 = vmul.f32 %v199, %v201
    %v203 = vadd.f32 %v199, %v202
    %vm204 = vweird.f32 %v198
    %vm205 = vweird.f32 %v199
    %vm206 = vmor %vm204, %vm205
    %v207 = vsel %vm206, %v199, %v203
    %v208 = vand.u32 2147483647, %v198
    %vm209 = vcmp.eq.f32.partialorder %v208, 8.507059e+37
    %v210 = vand.u32 %v198, 2147483648
    %v211 = vor.u32 1.1754944e-38, %v210
    %v212 = vsel %vm209, %v211, %v207
    %v213 = vmul.f32 %v188, %v212
    %v214 = vmin.f32 %v213, 1.0
    %v215 = vmax.f32 %v214, -1.0
    %v216 = vadd.f32 %v175, 1.0
    %v217 = vadd.f32 %v215, 1.0
    %v218 = vmul.f32 %v132, %v216
    %v219 = vmul.f32 %v133, %v217
    %v220 = vpack.c.bf16 %v219, %v218
    %v221 = vld [vmem:[%s5] sm:$0xf]
    %v222 = vld [vmem:[%s5 + $0x4] sm:$0xf]
    %v223 = vld [vmem:[%s5 + $0x8] sm:$0xf]
    %v224 = vld [vmem:[%s5 + $0xc] sm:$0xf]
    %v225 = vld [vmem:[%s5 + $0x10] sm:$0xf]
    %v226 = vld [vmem:[%s5 + $0x14] sm:$0xf]
    %v227 = vld [vmem:[%s5 + $0x18] sm:$0xf]
    %v228 = vld [vmem:[%s5 + $0x1c] sm:$0xf]
    %v229 = vld [vmem:[%s6] sm:$0x1]
    %v231 = vperm.slane %v229, 0
    %v241 = vunpack.c.l.b16 %v221
    %v242 = vunpack.c.l.b16 %v222
    %v243 = vunpack.c.l.b16 %v223
    %v244 = vunpack.c.l.b16 %v224
    %v245 = vunpack.c.l.b16 %v225
    %v246 = vunpack.c.l.b16 %v226
    %v247 = vunpack.c.l.b16 %v227
    %v248 = vunpack.c.l.b16 %v228
    %v249 = vpack.c.b16 %v242, %v241
    %v250 = vpack.c.b16 %v244, %v243
    %v251 = vpack.c.b16 %v246, %v245
    %v252 = vpack.c.b16 %v248, %v247
    %vm257 = vcmask 523264
    %v259 = vsel %vm257, %v220, 0
    %261 = vmatpush.bf16.msra.mxu0 0
    %262 = vmatpush.bf16.msra.mxu0 0
    %263 = vmatpush.bf16.msra.mxu0 0
    %264 = vmatpush.bf16.msra.mxu0 0
    %265 = vmatpush.bf16.msra.mxu0 %v252
    %266 = vmatpush.bf16.msra.mxu0 %v251
    %267 = vmatpush.bf16.msra.mxu0 %v250
    %268 = vmatpush.bf16.msra.mxu0 %v249
    %269 = vmatmul.bf16.gmra.mxu0 %v259
    %v270 = vpop.f32.mrf.mxu0
    %v271 = vadd.f32 %v231, %v270
    %v272 = vpop.f32.mrf.mxu0
    %v273 = vadd.f32 %v231, %v272
    %274 = vdwg.mxu0
    %275 = vst.msk [vmem:[#allocation2] sm:$0xff] %vm30, %v271
    %276 = vst.msk [vmem:[#allocation2 + $0x8] sm:$0xff] %vm30, %v273
    // Predicated region
    $region30: #{tpu_custom_call.1} parent=1 // pred_check
      _
    $region31: #{tpu_custom_call.1} parent=1 // pred_check_branch
      %278 = sbr.rel (0) target = $region33
    $region32: #{tpu_custom_call.1} parent=1 // pred_region
      %280 = vsyncadd [#allocation3], 0
      %s281 = sshll.u32 [#allocation2], 4
      %s282 = int_to_ptr.vmem [resolvable:$true] %s281
      %s283 = sshll.u32 %s7, 4
      %s284 = int_to_ptr.hbm [resolvable:$true] %s283
      %289 = dma.vmem_to_hbm [thread:$0]  %s282, 256, %s284, [#allocation3], 128, 128, 8
    $region33: #{tpu_custom_call.1} parent=1 // pred_fallthru
      _
    // Predicated region
    $region34: #{tpu_custom_call.1} parent=1 // pred_check
      _
    $region35: #{tpu_custom_call.1} parent=1 // pred_check_branch
      %291 = sbr.rel (0) target = $region37
    $region36: #{tpu_custom_call.1} parent=1 // pred_region
      %293 = dma.done [#allocation3], 256
    $region37: #{tpu_custom_call.1} parent=1 // pred_fallthru
      _
    %294 = vsyncpa [#allocation3], 1

</llo_original>
